<compile_context>
chip_gen: v5e
topology: v5e:2x2
jax: 0.10.0
libtpu: 0.0.40
codegen_flags: <defaults>
</compile_context>

<pallas_src>
import jax
import jax.numpy as jnp
from jax import lax
from jax.experimental import pallas as pl
from jax.experimental.pallas import tpu as pltpu


def _round_up(x, m):
    return ((x + m - 1) // m) * m


def _round_down(x, m):
    return (x // m) * m


def _nconv_kernel(at_ref, x_ref, o_ref):
    # at_ref: (W, V) resident across the grid; x_ref: (V, TN); o_ref: (W, TN)
    # Natural (M, K) x (K, N) orientation for the MXU, f32 accumulation:
    #   out[w, n] = sum_v A^T[w, v] * x[v, n]
    o_ref[...] = lax.dot_general(
        at_ref[...], x_ref[...],
        dimension_numbers=(((1,), (0,)), ((), ())),
        preferred_element_type=jnp.float32,
    ).astype(o_ref.dtype)


def fold_ncvl(x):
    """(N, C, V, L) -> (V, N*C*L) lane-dense layout (one HBM relayout copy).

    Hoist this across the Graph-WaveNet diffusion loop: fold once per GCN
    block, chain `nconv_folded`, unfold once (reviewer option (a))."""
    N, C, V, L = x.shape
    return jnp.transpose(x, (2, 0, 1, 3)).reshape(V, N * C * L)


def unfold_ncwl(yt, ncl):
    """(W, N*C*L) -> (N, C, W, L) (one HBM relayout copy)."""
    N, C, L = ncl
    W = yt.shape[0]
    return jnp.transpose(yt.reshape(W, N, C, L), (1, 2, 0, 3))


def nconv_folded(xt, A):
    """Folded-layout nconv: xt (V, M) -> (W, M), M = N*C*L.

    The output is itself a valid folded input (W plays the role of V), so the
    k-hop diffusion chain in `gcn` can stay in this layout with zero relayouts
    between hops."""
    V, M = xt.shape
    V2, W = A.shape
    assert V == V2, "contraction dims must match"

    out_dtype = jnp.result_type(xt.dtype, A.dtype)
    xt = xt.astype(out_dtype)
    # Tiny one-time transpose so the resident operand is in (M, K) orientation.
    At = jnp.transpose(A).astype(out_dtype)                     # (W, V)

    bytes_el = jnp.dtype(out_dtype).itemsize
    Vp, Wp = _round_up(V, 8), _round_up(W, 8)                   # sublane padding

    # --- Tile size from the per-core VMEM budget (v5e/v6e: 128 MiB, v7x: 64). ---
    try:
        vmem_cap = int(pltpu.get_tpu_info().vmem_capacity_bytes)
    except Exception:
        vmem_cap = 64 << 20            # conservative default = v7x per-TC VMEM
    budget = int(vmem_cap * 0.7)       # headroom for A^T + Mosaic internal scratch

    # Double-buffered x and out tiles: 2 * itemsize * (Vp + Wp) bytes per lane col.
    tn = _round_down(max(budget // (2 * bytes_el * (Vp + Wp)), 128), 128)
    # Keep >= 2 grid steps when possible so "parallel" shards across v7x's 2 TCs.
    m_tiles = pl.cdiv(M, 128)
    if m_tiles >= 2:
        tn = min(tn, max(m_tiles // 2, 1) * 128)
    tn = max(min(tn, _round_up(M, 128)), 128)

    grid = (pl.cdiv(M, tn),)

    vmem_need = (2 * bytes_el * tn * (Vp + Wp)                  # x/out double buffers
                 + 2 * bytes_el * Wp * _round_up(V, 128))       # resident A^T buffers
    vmem_limit = min(max(16 << 20, vmem_need + (4 << 20)), int(vmem_cap * 0.85))

    cost = pl.CostEstimate(
        flops=2 * V * W * M,
        transcendentals=0,
        bytes_accessed=bytes_el * (V * M + W * M + V * W),
    )

    return pl.pallas_call(
        _nconv_kernel,
        out_shape=jax.ShapeDtypeStruct((W, M), out_dtype),
        grid_spec=pltpu.PrefetchScalarGridSpec(
            num_scalar_prefetch=0,
            grid=grid,
            in_specs=[
                pl.BlockSpec((W, V), lambda i: (0, 0)),     # A^T: resident across grid
                pl.BlockSpec((V, tn), lambda i: (0, i)),    # lane-dense x tile
            ],
            out_specs=pl.BlockSpec((W, tn), lambda i: (0, i)),
        ),
        compiler_params=pltpu.CompilerParams(
            dimension_semantics=("parallel",),              # independent lane tiles
            vmem_limit_bytes=vmem_limit,
        ),
        cost_estimate=cost,
    )(At, xt)


def nconv(x, A, *, min_pallas_cols=1024):
    """Drop-in einsum('ncvl,vw->ncwl', x, A).  x: (N,C,V,L), A: (V,W) -> (N,C,W,L)."""
    N, C, V, L = x.shape
    V2, W = A.shape
    assert V == V2, "contraction dims must match"
    M = N * C * L

    # Fast path: for tiny problems the fold/unfold relayouts + a one-step
    # pallas_call are pure overhead; XLA's fused einsum wins.
    if M < min_pallas_cols:
        return jnp.einsum("ncvl,vw->ncwl", x, A)

    xt = fold_ncvl(x)                    # one relayout copy (hoist via folded API)
    yt = nconv_folded(xt, A)             # (W, M), no pad / no slice copies
    return unfold_ncwl(yt, (N, C, L))    # one relayout copy


if __name__ == "__main__":
    key = jax.random.PRNGKey(0)
    kx, ka = jax.random.split(key)

    # Small shapes consistent with the module: N=2, C=4, V=16 nodes, L=16 steps.
    N, C, V, L, W = 2, 4, 16, 16, 16
    x = jax.random.normal(kx, (N, C, V, L), dtype=jnp.float32)
    A = jax.random.normal(ka, (V, W), dtype=jnp.float32)

    ref = jnp.einsum("ncvl,vw->ncwl", x, A)

    # 1) Drop-in wrapper, Pallas path forced (min_pallas_cols=0).
    out = jax.block_until_ready(nconv(x, A, min_pallas_cols=0))
    assert out.shape == ref.shape == (N, C, W, L)
    assert jnp.allclose(out, ref, atol=1e-5, rtol=1e-5)

    # 2) Hoisted / folded path (reviewer option (a)): fold once, chain two
    #    diffusion hops with zero intermediate relayouts, unfold once.
    xt = fold_ncvl(x)
    y1 = nconv_folded(xt, A)             # hop 1, folded layout
    y2 = nconv_folded(y1, A)             # hop 2 chains directly
    out2 = unfold_ncwl(jax.block_until_ready(y2), (N, C, L))
    ref2 = jnp.einsum("ncvl,vw->ncwl", ref, A)
    assert jnp.allclose(out2, ref2, atol=1e-3, rtol=1e-4)

    # 3) Default drop-in on a tiny problem exercises the einsum fast path.
    out3 = jax.block_until_ready(nconv(x, A))
    assert jnp.allclose(out3, ref, atol=1e-5, rtol=1e-5)

    print("KERNEL_OK")
</pallas_src>

<mosaic_0001>
module attributes {stable_mosaic.version = 11 : i64} {
  func.func @_nconv_kernel(%arg0: i32, %arg1: memref<16x16xf32, #tpu.memory_space<vmem>>, %arg2: memref<16x128xf32, #tpu.memory_space<vmem>>, %arg3: memref<16x128xf32, #tpu.memory_space<vmem>>) attributes {dimension_semantics = [#tpu.dimension_semantics<parallel>], iteration_bounds = array<i64: 1>, scalar_prefetch = 0 : i64, scratch_operands = 0 : i64, tpu.core_type = #tpu.core_type<tc>, window_params = [{pipeline_mode = #tpu.pipeline_mode<synchronous>, transform_indices = @transform_0, window_bounds = array<i64: 16, 16>}, {transform_indices = @transform_1, window_bounds = array<i64: 16, 128>}, {transform_indices = @transform_2, window_bounds = array<i64: 16, 128>}]} {
    %c0 = arith.constant 0 : index
    %c0_0 = arith.constant 0 : index
    %0 = vector.load %arg1[%c0, %c0_0] : memref<16x16xf32, #tpu.memory_space<vmem>>, vector<16x16xf32>
    %c0_1 = arith.constant 0 : index
    %c0_2 = arith.constant 0 : index
    %1 = vector.load %arg2[%c0_1, %c0_2] : memref<16x128xf32, #tpu.memory_space<vmem>>, vector<16x128xf32>
    %cst = arith.constant dense<0.000000e+00> : vector<16x128xf32>
    %2 = tpu.matmul %0, %1, %cst {dimension_numbers = #tpu.dot_dimension_numbers<[1], [0], [0], [1], [0, 0, 1, 1], [], []>} : vector<16x16xf32>, vector<16x128xf32>, vector<16x128xf32> -> vector<16x128xf32>
    %c0_3 = arith.constant 0 : index
    %c0_4 = arith.constant 0 : index
    %3 = vector.load %arg3[%c0_3, %c0_4] : memref<16x128xf32, #tpu.memory_space<vmem>>, vector<16x128xf32>
    tpu.vector_store %arg3[%c0_3, %c0_4], %2 {strides = array<i32>} : memref<16x128xf32, #tpu.memory_space<vmem>>, vector<16x128xf32>,
    return
  }
  func.func @transform_0(%arg0: i32) -> (i32, i32) {
    %c0_i32 = arith.constant 0 : i32
    %c0_i32_0 = arith.constant 0 : i32
    %c0_i32_1 = arith.constant 0 : i32
    return %c0_i32, %c0_i32_0 : i32, i32
  }
  func.func @transform_1(%arg0: i32) -> (i32, i32) {
    %c0_i32 = arith.constant 0 : i32
    %c0_i32_0 = arith.constant 0 : i32
    return %c0_i32, %arg0 : i32, i32
  }
  func.func @transform_2(%arg0: i32) -> (i32, i32) {
    %c0_i32 = arith.constant 0 : i32
    %c0_i32_0 = arith.constant 0 : i32
    return %c0_i32, %arg0 : i32, i32
  }
}

</mosaic_0001>

<llo_original>
// kernel: tpu_custom_call.1
$region0: #{tpu_custom_call.1}
  #allocation0 [shape = 'u32[]', space=smem, size = 0x4, offset = 0x4, fixed_abs, tag = 'smem constant byte address 0x4 - core index']
  #allocation1 [shape = 'u32[72,128]{1,0:T(1,128)}', space=vmem, size = 0x9000, scoped, tag = 'internal scratch']
  %s0 = inlined_call_operand.hbm [shape: f32[16,16], index: 0, kind: input, shape index: {}]
  %s1 = inlined_call_operand.hbm [shape: f32[16,128], index: 1, kind: input, shape index: {}]
  %s2 = inlined_call_operand.hbm [shape: f32[16,128], index: 2, kind: output, shape index: {}]
  %s3 = sld [smem:[#allocation0]]
  $region26: #{tpu_custom_call.1} parent=0
    _
  %s5 = ssub.s32 1, %s3
  %s6 = scalar_select 0, %s5, %s3
  $region1: #{tpu_custom_call.1} parent=0
    #allocation2 [shape = 'u8[8192]{0}', space=vmem, size = 0x2000, scoped, tag = 'input window, operand 0, single buffered']
    #allocation3 [shape = 's32[1]{0}', space=sflag, size = 0x4, scoped, tag = 'scoped memory for tpu_custom_call.1']
    #allocation4 [shape = 's32[1]{0}', space=sflag, size = 0x4, scoped, tag = 'scoped memory for tpu_custom_call.1']
    #allocation5 [shape = 'u8[8192]{0}', space=vmem, size = 0x2000, scoped, tag = 'input window, operand 1, single buffered']
    #allocation6 [shape = 's32[1]{0}', space=sflag, size = 0x4, scoped, tag = 'scoped memory for tpu_custom_call.1']
    #allocation7 [shape = 'u8[8192]{0}', space=vmem, size = 0x2000, scoped, tag = 'output window, operand 0, single buffered']
    %7 = vsyncpa [#allocation3], 0
    %8 = vsyncpa [#allocation6], 0
    %9 = vsyncpa [#allocation4], 0
    // Predicated region
    $region2: #{tpu_custom_call.1} parent=1 // pred_check
      _
    $region3: #{tpu_custom_call.1} parent=1 // pred_check_branch
      %11 = sbr.rel (0) target = $region5
    $region4: #{tpu_custom_call.1} parent=1 // pred_region
      %13 = vsyncadd [#allocation3], 0
      %s14 = sshll.u32 %s0, 4
      %s15 = int_to_ptr.hbm [resolvable:$true] %s14
      %s16 = sshll.u32 [#allocation2], 4
      %s17 = int_to_ptr.vmem [resolvable:$true] %s16
      %22 = dma.hbm_to_vmem [thread:$0]  %s15, 256, %s17, [#allocation3], 128, 128, 8
    $region5: #{tpu_custom_call.1} parent=1 // pred_fallthru
      _
    // Predicated region
    $region6: #{tpu_custom_call.1} parent=1 // pred_check
      _
    $region7: #{tpu_custom_call.1} parent=1 // pred_check_branch
      %24 = sbr.rel (0) target = $region9
    $region8: #{tpu_custom_call.1} parent=1 // pred_region
      %26 = vsyncadd [#allocation6], 0
      %s27 = sshll.u32 %s1, 4
      %s28 = int_to_ptr.hbm [resolvable:$true] %s27
      %s29 = sshll.u32 [#allocation5], 4
      %s30 = int_to_ptr.vmem [resolvable:$true] %s29
      %35 = dma.hbm_to_vmem [thread:$0]  %s28, 256, %s30, [#allocation6], 128, 128, 8
    $region9: #{tpu_custom_call.1} parent=1 // pred_fallthru
      _
    // Predicated region
    $region10: #{tpu_custom_call.1} parent=1 // pred_check
      _
    $region11: #{tpu_custom_call.1} parent=1 // pred_check_branch
      %37 = sbr.rel (0) target = $region13
    $region12: #{tpu_custom_call.1} parent=1 // pred_region
      %39 = dma.done [#allocation3], 256
    $region13: #{tpu_custom_call.1} parent=1 // pred_fallthru
      _
    // Predicated region
    $region14: #{tpu_custom_call.1} parent=1 // pred_check
      _
    $region15: #{tpu_custom_call.1} parent=1 // pred_check_branch
      %41 = sbr.rel (0) target = $region17
    $region16: #{tpu_custom_call.1} parent=1 // pred_region
      %43 = dma.done [#allocation6], 256
    $region17: #{tpu_custom_call.1} parent=1 // pred_fallthru
      _
    %v44 = vld [vmem:[#allocation2] sm:$0xff]
    %v45 = vld [vmem:[#allocation2 + $0x8] sm:$0xff]
    %v46 = vld [vmem:[#allocation5] sm:$0xff]
    %v47 = vld [vmem:[#allocation5 + $0x8] sm:$0xff]
    %vm48 = vcmask 130048
    %v50 = vsel %vm48, %v44, 0
    %v53 = vsel %vm48, %v45, 0
    %55 = vmatpush.msra.mxu0 0.0
    %56 = vmatpush.msra.mxu0 0.0
    %57 = vmatpush.msra.mxu0 0.0
    %58 = vmatpush.msra.mxu0 0.0
    %59 = vmatpush.msra.mxu0 0.0
    %60 = vmatpush.msra.mxu0 0.0
    %61 = vmatpush.msra.mxu0 0.0
    %62 = vmatpush.msra.mxu0 0.0
    %63 = vmatpush.msra.mxu0 0.0
    %64 = vmatpush.msra.mxu0 0.0
    %65 = vmatpush.msra.mxu0 0.0
    %66 = vmatpush.msra.mxu0 0.0
    %67 = vmatpush.msra.mxu0 0.0
    %68 = vmatpush.msra.mxu0 0.0
    %69 = vmatpush.msra.mxu0 %v47
    %70 = vmatpush.msra.mxu0 %v46
    %71 = vmatmul.f32.gmra.mxu0 %v50
    %v72 = vpop.f32.mrf.mxu0
    %v73 = vadd.f32 0.0, %v72
    %74 = vmatmul.f32.gmra.mxu0 %v53
    %v75 = vpop.f32.mrf.mxu0
    %v76 = vadd.f32 0.0, %v75
    %77 = vdwg.mxu0
    %78 = vst [vmem:[#allocation7] sm:$0xff] %v73
    %79 = vst [vmem:[#allocation7 + $0x8] sm:$0xff] %v76
    // Predicated region
    $region18: #{tpu_custom_call.1} parent=1 // pred_check
      _
    $region19: #{tpu_custom_call.1} parent=1 // pred_check_branch
      %81 = sbr.rel (0) target = $region21
    $region20: #{tpu_custom_call.1} parent=1 // pred_region
      %83 = vsyncadd [#allocation4], 0
      %s84 = sshll.u32 [#allocation7], 4
      %s85 = int_to_ptr.vmem [resolvable:$true] %s84
      %s86 = sshll.u32 %s2, 4
      %s87 = int_to_ptr.hbm [resolvable:$true] %s86
      %92 = dma.vmem_to_hbm [thread:$0]  %s85, 256, %s87, [#allocation4], 128, 128, 8
    $region21: #{tpu_custom_call.1} parent=1 // pred_fallthru
      _
    // Predicated region
    $region22: #{tpu_custom_call.1} parent=1 // pred_check
      _
    $region23: #{tpu_custom_call.1} parent=1 // pred_check_branch
      %94 = sbr.rel (0) target = $region25
    $region24: #{tpu_custom_call.1} parent=1 // pred_region
      %96 = dma.done [#allocation4], 256
    $region25: #{tpu_custom_call.1} parent=1 // pred_fallthru
      _
    %97 = vsyncpa [#allocation3], 1
    %98 = vsyncpa [#allocation6], 1
    %99 = vsyncpa [#allocation4], 1

</llo_original>
